<compile_context>
chip_gen: v7x
topology: tpu7x:2x2x1
jax: 0.10.0
libtpu: 0.0.40
codegen_flags: <defaults>
</compile_context>

<pallas_src>
import jax
import jax.numpy as jnp
from jax.experimental import pallas as pl
from jax.experimental.pallas import tpu as pltpu


def _identity_kernel(x_ref, o_ref):
    # Whole-tile load / store: the entire forward of BaseVAE (no defined compute).
    o_ref[...] = x_ref[...]


def _row_tile(R: int, L: int, itemsize: int) -> int:
    """Pick a row-tile size targeting ~2 MiB per tile.

    Keeps the 4x double-buffered (in + out) VMEM footprint well under the
    smallest scoped-VMEM default (v5e: 16 MiB) and v7x's 32 MiB scoped limit.
    Rows are a multiple of 32 so packed dtypes (bf16/int8/fp8) also satisfy
    the sublane tiling constraint; falls back to the full extent for small R
    (a full-extent block is always layout-legal).
    """
    target_bytes = 2 * 1024 * 1024
    rows = target_bytes // max(1, L * itemsize)
    rows = (rows // 32) * 32
    if rows < 32 or rows >= R:
        return R
    return rows


@jax.jit
def base_vae_forward(x: jax.Array) -> jax.Array:
    """Pass-through forward of the abstract BaseVAE via a tiled Pallas copy.

    x: (B, C, H, W) array (any float dtype).
    returns: array of identical shape/dtype/values.
    """
    B, C, H, W = x.shape
    # Flatten to a lane-dense 2D slab: rows = B*C, cols = H*W (last dim -> lanes).
    x2d = x.reshape(B * C, H * W)
    R, L = x2d.shape

    tr = _row_tile(R, L, x2d.dtype.itemsize)
    grid = (pl.cdiv(R, tr),)

    out2d = pl.pallas_call(
        _identity_kernel,
        out_shape=jax.ShapeDtypeStruct((R, L), x2d.dtype),
        grid=grid,
        in_specs=[pl.BlockSpec((tr, L), lambda i: (i, 0))],
        out_specs=pl.BlockSpec((tr, L), lambda i: (i, 0)),
        # Identity copy: alias input 0 to output 0 so XLA can elide the copy
        # entirely (no extra HBM traffic) whenever the buffer is donatable.
        input_output_aliases={0: 0},
        compiler_params=pltpu.CompilerParams(
            # One tiled axis; "parallel" lets v7x shard tiles across its
            # two TensorCores (neutral on single-core v5e/v6e).
            dimension_semantics=("parallel",)
        ),
    )(x2d)

    return out2d.reshape(B, C, H, W)


if __name__ == "__main__":
    key = jax.random.PRNGKey(0)
    # Small shapes consistent with a VAE image input: batch=2, channels=4, 16x16.
    x = jax.random.normal(key, (2, 4, 16, 16), dtype=jnp.float32)

    y = base_vae_forward(x)
    jax.block_until_ready(y)

    # Sanity check: abstract BaseVAE defines no transform -> identity semantics.
    assert y.shape == x.shape and y.dtype == x.dtype
    assert bool(jnp.allclose(y, x))

    print("KERNEL_OK")
</pallas_src>

<mosaic_0001>
module attributes {stable_mosaic.version = 11 : i64} {
  func.func @_identity_kernel(%arg0: i32, %arg1: memref<8x256xf32, #tpu.memory_space<vmem>>, %arg2: memref<8x256xf32, #tpu.memory_space<vmem>>) attributes {dimension_semantics = [#tpu.dimension_semantics<parallel>], iteration_bounds = array<i64: 1>, scalar_prefetch = 0 : i64, scratch_operands = 0 : i64, tpu.core_type = #tpu.core_type<tc>, window_params = [{transform_indices = @transform_0, window_bounds = array<i64: 8, 256>}, {transform_indices = @transform_1, window_bounds = array<i64: 8, 256>}]} {
    %c0 = arith.constant 0 : index
    %c0_0 = arith.constant 0 : index
    %0 = vector.load %arg1[%c0, %c0_0] : memref<8x256xf32, #tpu.memory_space<vmem>>, vector<8x256xf32>
    %c0_1 = arith.constant 0 : index
    %c0_2 = arith.constant 0 : index
    %1 = vector.load %arg2[%c0_1, %c0_2] : memref<8x256xf32, #tpu.memory_space<vmem>>, vector<8x256xf32>
    tpu.vector_store %arg2[%c0_1, %c0_2], %0 {strides = array<i32>} : memref<8x256xf32, #tpu.memory_space<vmem>>, vector<8x256xf32>,
    return
  }
  func.func @transform_0(%arg0: i32) -> (i32, i32) {
    %c0_i32 = arith.constant 0 : i32
    %c0_i32_0 = arith.constant 0 : i32
    return %arg0, %c0_i32 : i32, i32
  }
  func.func @transform_1(%arg0: i32) -> (i32, i32) {
    %c0_i32 = arith.constant 0 : i32
    %c0_i32_0 = arith.constant 0 : i32
    return %arg0, %c0_i32 : i32, i32
  }
}

</mosaic_0001>

<llo_original>
// kernel: base_vae_forward.1
$region0: #{base_vae_forward.1}
  #allocation0 [shape = 'u32[]', space=smem, size = 0x4, offset = 0x4, fixed_abs, tag = 'smem constant byte address 0x4 - core index']
  #allocation1 [shape = 'u32[144,128]{1,0:T(1,128)}', space=vmem, size = 0x12000, scoped, tag = 'internal scratch']
  %s0 = inlined_call_operand.vmem [shape: f32[8,256], index: 0, kind: input, shape index: {}, may-alias: {0,1}]
  %s1 = inlined_call_operand.vmem [shape: f32[8,256], index: 1, kind: output, shape index: {}, may-alias: {0,1}]
  %s2 = sld [smem:[#allocation0]]
  $region14: #{base_vae_forward.1} parent=0
    _
  %s4 = ssub.s32 1, %s2
  %s5 = scalar_select 0, %s4, %s2
  // Predicated region
  $region2: #{base_vae_forward.1} parent=0 // pred_check
    _
  $region3: #{base_vae_forward.1} parent=0 // pred_check_branch
    %7 = sbr.rel (0) target = $region5
  $region4: #{base_vae_forward.1} parent=0 // pred_region
    _
  $region5: #{base_vae_forward.1} parent=0 // pred_fallthru
    _
  %v8 = vld [vmem:[%s0] sm:$0xff]
  %v9 = vld [vmem:[%s0 + $0x8] sm:$0xff]
  %10 = vst [vmem:[%s1] sm:$0xff] %v8
  %11 = vst [vmem:[%s1 + $0x8] sm:$0xff] %v9
  // Predicated region
  $region6: #{base_vae_forward.1} parent=0 // pred_check
    _
  $region7: #{base_vae_forward.1} parent=0 // pred_check_branch
    %13 = sbr.rel (0) target = $region9
  $region8: #{base_vae_forward.1} parent=0 // pred_region
    _
  $region9: #{base_vae_forward.1} parent=0 // pred_fallthru
    _
  // Predicated region
  $region10: #{base_vae_forward.1} parent=0 // pred_check
    _
  $region11: #{base_vae_forward.1} parent=0 // pred_check_branch
    %15 = sbr.rel (0) target = $region13
  $region12: #{base_vae_forward.1} parent=0 // pred_region
    _
  $region13: #{base_vae_forward.1} parent=0 // pred_fallthru
    _

</llo_original>
